<compile_context>
chip_gen: v7x
topology: tpu7x:2x2x1
jax: 0.10.0
libtpu: 0.0.40
codegen_flags: <defaults>
</compile_context>

<pallas_src>
import functools

import jax
import jax.numpy as jnp
from jax.experimental import pallas as pl
from jax.experimental.pallas import tpu as pltpu

LANES = 128
_TILE_ROWS = 32              # legal sublane-tile multiple for f32 / bf16 / int8 blocks
_BF16_FINITE_BITS = 0x7F81   # one past +inf's bit pattern: covers every non-negative value


def _load_terms(pred_ref, gt_ref, mask_ref, *, rows, block_rows):
    """Load one row block, sanitize ragged rows, return (bce, pos, neg) in f32.

    Shared by both kernels so the bf16 rounding of `neg * bce` is bit-identical between
    the stored map (pass 1) and the recomputed comparison values (pass 2).
    """
    p = pred_ref[...].astype(jnp.float32)
    g = gt_ref[...].astype(jnp.float32)
    m = mask_ref[...].astype(jnp.float32)

    if rows % block_rows != 0:
        # Last block is partial: OOB rows hold garbage (possibly NaN/Inf for float inputs)
        # which would poison the partial sums even after multiplying by mask = 0
        # (NaN * 0 = NaN), so sanitize all three maps.  Full blocks also compile these
        # selects, but the kernel is HBM-bound so the extra VPU work is hidden.
        base = pl.program_id(0) * block_rows
        ridx = base + jax.lax.broadcasted_iota(jnp.int32, p.shape, 0)
        valid = ridx < rows
        p = jnp.where(valid, p, 0.5)   # finite logs
        g = jnp.where(valid, g, 0.0)
        m = jnp.where(valid, m, 0.0)   # zero loss weight

    # F.binary_cross_entropy clamps the log terms at -100 (also neutralizes log(0)).
    # Keep the clamp applied BEFORE the g / (1-g) weighting to avoid 0 * -inf = NaN.
    log_p = jnp.maximum(jnp.log(p), -100.0)
    log_1mp = jnp.maximum(jnp.log(1.0 - p), -100.0)
    bce = -(g * log_p + (1.0 - g) * log_1mp)

    pos = g * m
    neg = (1.0 - g) * m
    return bce, pos, neg


def _bce_partials_kernel(pred_ref, gt_ref, mask_ref,
                         negloss_ref, pos_ref, neg_ref, posloss_ref,
                         *, rows, block_rows):
    """Pass 1: bf16 negative-loss map + lane-partial sums per row block."""
    bce, pos, neg = _load_terms(pred_ref, gt_ref, mask_ref,
                                rows=rows, block_rows=block_rows)
    negloss = neg * bce
    # bf16 map: halves the HBM write and the bytes read by each threshold-search pass.
    negloss_ref[...] = negloss.astype(jnp.bfloat16)
    # Sublane-only (VPU) reductions; the tiny final reduce over blocks happens in JAX.
    pos_ref[0] = jnp.sum(pos, axis=0, keepdims=True)
    neg_ref[0] = jnp.sum(neg, axis=0, keepdims=True)
    posloss_ref[0] = jnp.sum(pos * bce, axis=0, keepdims=True)


def _topk_stats_kernel(thr_ref, pred_ref, gt_ref, mask_ref,
                       sgt_ref, cgt_ref, seq_ref, ceq_ref,
                       *, rows, block_rows):
    """Pass 2: f32 sums/counts of negloss strictly above / exactly at the bf16 threshold."""
    bce, _, neg = _load_terms(pred_ref, gt_ref, mask_ref,
                              rows=rows, block_rows=block_rows)
    negloss = neg * bce
    # Quantize exactly like pass 1 stored it, so the counts match the bisection counts.
    nl_q = negloss.astype(jnp.bfloat16).astype(jnp.float32)
    thr = thr_ref[...]                      # (1, LANES) broadcast row, no scalar extraction
    above = nl_q > thr
    at = nl_q == thr
    zero = jnp.zeros_like(negloss)
    sgt_ref[0] = jnp.sum(jnp.where(above, negloss, zero), axis=0, keepdims=True)
    cgt_ref[0] = jnp.sum(above.astype(jnp.float32), axis=0, keepdims=True)
    seq_ref[0] = jnp.sum(jnp.where(at, negloss, zero), axis=0, keepdims=True)
    ceq_ref[0] = jnp.sum(at.astype(jnp.float32), axis=0, keepdims=True)


def _to_slab(x, pad_value):
    """Flatten to a lane-dense (rows, 128) slab in the array's own dtype.

    Zero-copy whenever numel % 128 == 0 (the common DBNet case); otherwise only the
    tiny lane tail is padded.
    """
    if x.dtype == jnp.bool_:
        x = x.astype(jnp.int8)              # 0/1 int8 is the cheap on-HBM form
    x = x.reshape(-1)
    rem = (-x.shape[0]) % LANES
    if rem:
        x = jnp.pad(x, (0, rem), constant_values=pad_value)
    return x.reshape(-1, LANES)


def _pick_block_rows(rows, max_block_rows, split_rows):
    max_block_rows = max(_TILE_ROWS, (max_block_rows // _TILE_ROWS) * _TILE_ROWS)
    if rows <= _TILE_ROWS or rows <= split_rows:
        return rows                         # single full-extent block (always a legal tile)
    # At least two grid steps so the "parallel" axis can be sharded across both v7x
    # TensorCores; capped so the double-buffered footprint fits default scoped VMEM.
    half = -(-rows // 2)
    return min(max_block_rows, ((half + _TILE_ROWS - 1) // _TILE_ROWS) * _TILE_ROWS)


def balance_bce_loss(pred, gt, mask, negative_ratio=3, eps=1e-6,
                     max_block_rows=4096, split_rows=1024):
    """BalanceLoss(balance_loss=True, main_loss_type='BCELoss') forward.

    pred: probabilities in (0, 1), any float dtype (kept in its native dtype on HBM).
    gt / mask: 0/1 maps — pass int8/uint8 (or bool) to halve their HBM read traffic.
    max_block_rows: 4096 fits every generation's default scoped VMEM; v6e/v7x may use 8192.
    """
    pf = _to_slab(pred, 0.5)                # padded pred=0.5 -> finite logs, zero weight
    gf = _to_slab(gt, 0)
    mf = _to_slab(mask, 0)

    rows = pf.shape[0]
    block_rows = _pick_block_rows(rows, max_block_rows, split_rows)
    num_blocks = pl.cdiv(rows, block_rows)

    map_spec = pl.BlockSpec((block_rows, LANES), lambda b: (b, 0))
    part_spec = pl.BlockSpec((1, 1, LANES), lambda b: (b, 0, 0))
    part_shape = jax.ShapeDtypeStruct((num_blocks, 1, LANES), jnp.float32)
    cparams = pltpu.CompilerParams(
        # No cross-step state -> fully parallel row loop (v7x may split it across both
        # TensorCores).  Raised VMEM limit so max_block_rows=8192 also works on v6e/v7x.
        dimension_semantics=("parallel",),
        vmem_limit_bytes=32 * 1024 * 1024,
    )

    # ---- pass 1: elementwise BCE, bf16 negloss map, lane-partial sums --------------------
    kernel1 = functools.partial(_bce_partials_kernel, rows=rows, block_rows=block_rows)
    negloss, pos_p, neg_p, posloss_p = pl.pallas_call(
        kernel1,
        out_shape=(jax.ShapeDtypeStruct((rows, LANES), jnp.bfloat16),
                   part_shape, part_shape, part_shape),
        grid=(num_blocks,),
        in_specs=[map_spec, map_spec, map_spec],
        out_specs=(map_spec, part_spec, part_spec, part_spec),
        compiler_params=cparams,
    )(pf, gf, mf)

    # Sums of 0/1 maps are exact in f32 below ~2^24 elements per reduction (fine for
    # DBNet-scale maps); the block partials themselves are bounded by block_rows.
    pos_sum = jnp.sum(pos_p)
    neg_sum = jnp.sum(neg_p)
    pos_loss_sum = jnp.sum(posloss_p)
    positive_count = jnp.floor(pos_sum).astype(jnp.int32)
    neg_cap = jnp.minimum(neg_sum, positive_count.astype(jnp.float32) * negative_ratio)
    negative_count = jnp.floor(neg_cap).astype(jnp.int32)

    # ---- dynamic-k selection without a full sort ------------------------------------------
    # Bisection over the (order-preserving, non-negative) uint16 bit patterns of the bf16
    # negloss map finds the exact k-th largest bf16 value in 16 mem-bound count passes
    # (2 B/elem each), replacing the O(N log N) multi-pass XLA sort of v2.
    # Padding / masked elements are exactly 0 and never perturb the selection.
    neg_bits = jax.lax.bitcast_convert_type(negloss, jnp.uint16)
    k_search = jnp.maximum(negative_count, 1)   # keep the search well-defined when k == 0

    def _bisect(_, carry):
        lo, hi = carry
        mid = (lo + hi) // 2
        cnt = jnp.sum((neg_bits >= mid.astype(jnp.uint16)).astype(jnp.int32))
        take = cnt >= k_search
        return jnp.where(take, mid, lo), jnp.where(take, hi, mid)

    thr_bits, _ = jax.lax.fori_loop(
        0, 16, _bisect, (jnp.int32(0), jnp.int32(_BF16_FINITE_BITS)))
    thr_val = jax.lax.bitcast_convert_type(
        thr_bits.astype(jnp.uint16), jnp.bfloat16).astype(jnp.float32)
    thr_row = jnp.full((1, LANES), thr_val, jnp.float32)
    # TODO(synk): if the 16 count passes ever dominate for huge maps, switch to a multi-way
    # search (several thresholds per pass) to cut the number of passes over the bf16 map.

    # ---- pass 2: f32-accurate thresholded sums --------------------------------------------
    kernel2 = functools.partial(_topk_stats_kernel, rows=rows, block_rows=block_rows)
    sgt_p, cgt_p, seq_p, ceq_p = pl.pallas_call(
        kernel2,
        out_shape=(part_shape,) * 4,
        grid=(num_blocks,),
        in_specs=[pl.BlockSpec((1, LANES), lambda b: (0, 0)),
                  map_spec, map_spec, map_spec],
        out_specs=(part_spec,) * 4,
        compiler_params=cparams,
    )(thr_row, pf, gf, mf)

    sum_above = jnp.sum(sgt_p)
    cnt_above = jnp.sum(cgt_p)
    sum_at = jnp.sum(seq_p)
    cnt_at = jnp.sum(ceq_p)

    kf = negative_count.astype(jnp.float32)
    # Elements strictly above the threshold are summed in f32; the remaining (k - cnt_above)
    # elements all round to the threshold's bf16 value -> interpolate by their f32 mean
    # (exact when every tie is taken, sub-ulp error otherwise).
    take_at = jnp.clip(kf - cnt_above, 0.0, cnt_at)
    topk_sum = sum_above + take_at * (sum_at / jnp.maximum(cnt_at, 1.0))

    pc = positive_count.astype(jnp.float32)
    balance = jnp.where(
        negative_count > 0,
        (pos_loss_sum + topk_sum) / (pc + kf + eps),
        pos_loss_sum / (pc + eps),
    )
    return balance


def _reference(pred, gt, mask, negative_ratio=3, eps=1e-6):
    """Pure-JAX reference mirroring the PyTorch module (sort-based top-k)."""
    positive = gt * mask
    negative = (1.0 - gt) * mask
    positive_count = int(jnp.floor(positive.sum()))
    negative_count = int(jnp.floor(jnp.minimum(negative.sum(),
                                               positive_count * negative_ratio)))
    log_p = jnp.maximum(jnp.log(pred), -100.0)
    log_1mp = jnp.maximum(jnp.log(1.0 - pred), -100.0)
    loss = -(gt * log_p + (1.0 - gt) * log_1mp)
    positive_loss = positive * loss
    negative_loss = (negative * loss).reshape(-1)
    if negative_count > 0:
        topk = jnp.sort(negative_loss)[::-1][:negative_count]
        return (positive_loss.sum() + topk.sum()) / (positive_count + negative_count + eps)
    return positive_loss.sum() / (positive_count + eps)


if __name__ == "__main__":
    key = jax.random.PRNGKey(0)
    keys = jax.random.split(key, 12)

    def _check(pred, gt, mask, rtol, **kw):
        out = jax.block_until_ready(balance_bce_loss(pred, gt, mask, **kw))
        ref = _reference(pred.astype(jnp.float32),
                         gt.astype(jnp.float32), mask.astype(jnp.float32))
        assert jnp.allclose(out, ref, rtol=rtol, atol=1e-6), (out, ref)

    # 1) Nominal small NCHW maps: single full-extent block, zero-copy slab; the 3x cap
    #    does not bind, so the top-k takes every negative pixel.
    shape = (2, 4, 16, 16)
    pred1 = jax.nn.sigmoid(jax.random.normal(keys[0], shape, jnp.float32))
    gt1 = jax.random.bernoulli(keys[1], 0.3, shape).astype(jnp.int8)
    mask1 = jax.random.bernoulli(keys[2], 0.9, shape).astype(jnp.int8)
    _check(pred1, gt1, mask1, rtol=1e-4)

    # 2) Sparse positives: the 3x cap binds -> genuine partial top-k via the threshold
    #    search; also forces the multi-block grid + ragged last block (rows=45, block=32).
    #    rtol relaxed to 5e-4 for the mean-interpolation of exact bf16 ties at the boundary.
    shape2 = (1, 5, 9, 128)
    pred2 = jax.nn.sigmoid(jax.random.normal(keys[3], shape2, jnp.float32))
    gt2 = jax.random.bernoulli(keys[4], 0.05, shape2).astype(jnp.int8)
    mask2 = jax.random.bernoulli(keys[5], 0.9, shape2).astype(jnp.int8)
    _check(pred2, gt2, mask2, rtol=5e-4, max_block_rows=32, split_rows=0)

    # 3) numel not a multiple of 128 -> lane-tail padding path.
    shape3 = (2, 1, 7, 11)
    pred3 = jax.nn.sigmoid(jax.random.normal(keys[6], shape3, jnp.float32))
    gt3 = jax.random.bernoulli(keys[7], 0.2, shape3).astype(jnp.int8)
    mask3 = jax.random.bernoulli(keys[8], 0.95, shape3).astype(jnp.int8)
    _check(pred3, gt3, mask3, rtol=5e-4)

    # 4) Fully masked-out map -> negative_count == 0 branch.
    pred4 = jax.nn.sigmoid(jax.random.normal(keys[9], shape, jnp.float32))
    gt4 = jax.random.bernoulli(keys[10], 0.3, shape).astype(jnp.int8)
    mask4 = jnp.zeros(shape, jnp.int8)
    _check(pred4, gt4, mask4, rtol=1e-4)

    print("KERNEL_OK")
</pallas_src>

<mosaic_0001>
module attributes {stable_mosaic.version = 11 : i64} {
  func.func @_bce_partials_kernel(%arg0: i32, %arg1: memref<16x128xf32, #tpu.memory_space<vmem>>, %arg2: memref<16x128xi8, #tpu.memory_space<vmem>>, %arg3: memref<16x128xi8, #tpu.memory_space<vmem>>, %arg4: memref<16x128xbf16, #tpu.memory_space<vmem>>, %arg5: memref<1x1x128xf32, #tpu.memory_space<vmem>>, %arg6: memref<1x1x128xf32, #tpu.memory_space<vmem>>, %arg7: memref<1x1x128xf32, #tpu.memory_space<vmem>>) attributes {dimension_semantics = [#tpu.dimension_semantics<parallel>], iteration_bounds = array<i64: 1>, scalar_prefetch = 0 : i64, scratch_operands = 0 : i64, tpu.core_type = #tpu.core_type<tc>, window_params = [{transform_indices = @transform_0, window_bounds = array<i64: 16, 128>}, {transform_indices = @transform_1, window_bounds = array<i64: 16, 128>}, {transform_indices = @transform_2, window_bounds = array<i64: 16, 128>}, {transform_indices = @transform_3, window_bounds = array<i64: 16, 128>}, {transform_indices = @transform_4, window_bounds = array<i64: 1, 1, 128>}, {transform_indices = @transform_5, window_bounds = array<i64: 1, 1, 128>}, {transform_indices = @transform_6, window_bounds = array<i64: 1, 1, 128>}]} {
    %c0 = arith.constant 0 : index
    %c0_0 = arith.constant 0 : index
    %0 = vector.load %arg1[%c0, %c0_0] : memref<16x128xf32, #tpu.memory_space<vmem>>, vector<16x128xf32>
    %c0_1 = arith.constant 0 : index
    %c0_2 = arith.constant 0 : index
    %1 = vector.load %arg2[%c0_1, %c0_2] : memref<16x128xi8, #tpu.memory_space<vmem>>, vector<16x128xi8>
    %2 = arith.sitofp %1 : vector<16x128xi8> to vector<16x128xf32>
    %c0_3 = arith.constant 0 : index
    %c0_4 = arith.constant 0 : index
    %3 = vector.load %arg3[%c0_3, %c0_4] : memref<16x128xi8, #tpu.memory_space<vmem>>, vector<16x128xi8>
    %4 = arith.sitofp %3 : vector<16x128xi8> to vector<16x128xf32>
    %5 = math.log %0 : vector<16x128xf32>
    %cst = arith.constant -1.000000e+02 : f32
    %6 = vector.broadcast %cst : f32 to vector<16x128xf32>
    %7 = arith.maximumf %5, %6 : vector<16x128xf32>
    %cst_5 = arith.constant 1.000000e+00 : f32
    %8 = vector.broadcast %cst_5 : f32 to vector<16x128xf32>
    %9 = arith.subf %8, %0 : vector<16x128xf32>
    %10 = math.log %9 : vector<16x128xf32>
    %cst_6 = arith.constant -1.000000e+02 : f32
    %11 = vector.broadcast %cst_6 : f32 to vector<16x128xf32>
    %12 = arith.maximumf %10, %11 : vector<16x128xf32>
    %13 = arith.mulf %2, %7 : vector<16x128xf32>
    %cst_7 = arith.constant 1.000000e+00 : f32
    %14 = vector.broadcast %cst_7 : f32 to vector<16x128xf32>
    %15 = arith.subf %14, %2 : vector<16x128xf32>
    %16 = arith.mulf %15, %12 : vector<16x128xf32>
    %17 = arith.addf %13, %16 : vector<16x128xf32>
    %cst_8 = arith.constant 0.000000e+00 : f32
    %18 = vector.broadcast %cst_8 : f32 to vector<16x128xf32>
    %19 = arith.subf %18, %17 : vector<16x128xf32>
    %20 = arith.mulf %2, %4 : vector<16x128xf32>
    %cst_9 = arith.constant 1.000000e+00 : f32
    %21 = vector.broadcast %cst_9 : f32 to vector<16x128xf32>
    %22 = arith.subf %21, %2 : vector<16x128xf32>
    %23 = arith.mulf %22, %4 : vector<16x128xf32>
    %24 = arith.mulf %23, %19 : vector<16x128xf32>
    %25 = arith.truncf %24 : vector<16x128xf32> to vector<16x128xbf16>
    %c0_10 = arith.constant 0 : index
    %c0_11 = arith.constant 0 : index
    %26 = vector.load %arg4[%c0_10, %c0_11] : memref<16x128xbf16, #tpu.memory_space<vmem>>, vector<16x128xbf16>
    tpu.vector_store %arg4[%c0_10, %c0_11], %25 {strides = array<i32>} : memref<16x128xbf16, #tpu.memory_space<vmem>>, vector<16x128xbf16>,
    %cst_12 = arith.constant dense<0.000000e+00> : vector<128xf32>
    %27 = vector.multi_reduction <add>, %20, %cst_12 [0] : vector<16x128xf32> to vector<128xf32>
    %28 = vector.shape_cast %27 : vector<128xf32> to vector<1x128xf32>
    %c0_13 = arith.constant 0 : index
    %c0_14 = arith.constant 0 : index
    %c0_15 = arith.constant 0 : index
    %29 = vector.load %arg5[%c0_13, %c0_14, %c0_15] : memref<1x1x128xf32, #tpu.memory_space<vmem>>, vector<1x1x128xf32>
    %30 = vector.shape_cast %29 : vector<1x1x128xf32> to vector<1x128xf32>
    %31 = vector.shape_cast %28 : vector<1x128xf32> to vector<1x1x128xf32>
    tpu.vector_store %arg5[%c0_13, %c0_14, %c0_15], %31 {strides = array<i32>} : memref<1x1x128xf32, #tpu.memory_space<vmem>>, vector<1x1x128xf32>,
    %cst_16 = arith.constant dense<0.000000e+00> : vector<128xf32>
    %32 = vector.multi_reduction <add>, %23, %cst_16 [0] : vector<16x128xf32> to vector<128xf32>
    %33 = vector.shape_cast %32 : vector<128xf32> to vector<1x128xf32>
    %c0_17 = arith.constant 0 : index
    %c0_18 = arith.constant 0 : index
    %c0_19 = arith.constant 0 : index
    %34 = vector.load %arg6[%c0_17, %c0_18, %c0_19] : memref<1x1x128xf32, #tpu.memory_space<vmem>>, vector<1x1x128xf32>
    %35 = vector.shape_cast %34 : vector<1x1x128xf32> to vector<1x128xf32>
    %36 = vector.shape_cast %33 : vector<1x128xf32> to vector<1x1x128xf32>
    tpu.vector_store %arg6[%c0_17, %c0_18, %c0_19], %36 {strides = array<i32>} : memref<1x1x128xf32, #tpu.memory_space<vmem>>, vector<1x1x128xf32>,
    %37 = arith.mulf %20, %19 : vector<16x128xf32>
    %cst_20 = arith.constant dense<0.000000e+00> : vector<128xf32>
    %38 = vector.multi_reduction <add>, %37, %cst_20 [0] : vector<16x128xf32> to vector<128xf32>
    %39 = vector.shape_cast %38 : vector<128xf32> to vector<1x128xf32>
    %c0_21 = arith.constant 0 : index
    %c0_22 = arith.constant 0 : index
    %c0_23 = arith.constant 0 : index
    %40 = vector.load %arg7[%c0_21, %c0_22, %c0_23] : memref<1x1x128xf32, #tpu.memory_space<vmem>>, vector<1x1x128xf32>
    %41 = vector.shape_cast %40 : vector<1x1x128xf32> to vector<1x128xf32>
    %42 = vector.shape_cast %39 : vector<1x128xf32> to vector<1x1x128xf32>
    tpu.vector_store %arg7[%c0_21, %c0_22, %c0_23], %42 {strides = array<i32>} : memref<1x1x128xf32, #tpu.memory_space<vmem>>, vector<1x1x128xf32>,
    return
  }
  func.func @transform_0(%arg0: i32) -> (i32, i32) {
    %c0_i32 = arith.constant 0 : i32
    %c0_i32_0 = arith.constant 0 : i32
    return %arg0, %c0_i32 : i32, i32
  }
  func.func @transform_1(%arg0: i32) -> (i32, i32) {
    %c0_i32 = arith.constant 0 : i32
    %c0_i32_0 = arith.constant 0 : i32
    return %arg0, %c0_i32 : i32, i32
  }
  func.func @transform_2(%arg0: i32) -> (i32, i32) {
    %c0_i32 = arith.constant 0 : i32
    %c0_i32_0 = arith.constant 0 : i32
    return %arg0, %c0_i32 : i32, i32
  }
  func.func @transform_3(%arg0: i32) -> (i32, i32) {
    %c0_i32 = arith.constant 0 : i32
    %c0_i32_0 = arith.constant 0 : i32
    return %arg0, %c0_i32 : i32, i32
  }
  func.func @transform_4(%arg0: i32) -> (i32, i32, i32) {
    %c0_i32 = arith.constant 0 : i32
    %c0_i32_0 = arith.constant 0 : i32
    %c0_i32_1 = arith.constant 0 : i32
    return %arg0, %c0_i32, %c0_i32_0 : i32, i32, i32
  }
  func.func @transform_5(%arg0: i32) -> (i32, i32, i32) {
    %c0_i32 = arith.constant 0 : i32
    %c0_i32_0 = arith.constant 0 : i32
    %c0_i32_1 = arith.constant 0 : i32
    return %arg0, %c0_i32, %c0_i32_0 : i32, i32, i32
  }
  func.func @transform_6(%arg0: i32) -> (i32, i32, i32) {
    %c0_i32 = arith.constant 0 : i32
    %c0_i32_0 = arith.constant 0 : i32
    %c0_i32_1 = arith.constant 0 : i32
    return %arg0, %c0_i32, %c0_i32_0 : i32, i32, i32
  }
}

</mosaic_0001>

<llo_original>
// kernel: tpu_custom_call.1
$region0: #{tpu_custom_call.1}
  #allocation0 [shape = 'u32[]', space=smem, size = 0x4, offset = 0x4, fixed_abs, tag = 'smem constant byte address 0x4 - core index']
  #allocation1 [shape = 'u32[144,128]{1,0:T(1,128)}', space=vmem, size = 0x12000, scoped, tag = 'internal scratch']
  %s0 = inlined_call_operand.hbm [shape: f32[16,128], index: 0, kind: input, shape index: {}]
  %s1 = inlined_call_operand.hbm [shape: s8[16,128], index: 1, kind: input, shape index: {}]
  %s2 = inlined_call_operand.vmem [shape: s8[16,128], index: 2, kind: input, shape index: {}]
  %s3 = inlined_call_operand.hbm [shape: bf16[16,128], index: 3, kind: output, shape index: {0}]
  %s4 = inlined_call_operand.hbm [shape: f32[1,1,128], index: 4, kind: output, shape index: {1}]
  %s5 = inlined_call_operand.hbm [shape: f32[1,1,128], index: 5, kind: output, shape index: {2}]
  %s6 = inlined_call_operand.hbm [shape: f32[1,1,128], index: 6, kind: output, shape index: {3}]
  %7 = xla_tuple %s3, %s4, %s5, %s6
  %s8 = sld [smem:[#allocation0]]
  $region54: #{tpu_custom_call.1} parent=0
    _
  %s10 = ssub.s32 1, %s8
  %s11 = scalar_select 0, %s10, %s8
  $region1: #{tpu_custom_call.1} parent=0
    #allocation2 [shape = 'u8[8192]{0}', space=vmem, size = 0x2000, scoped, tag = 'input window, operand 0, single buffered']
    #allocation3 [shape = 's32[1]{0}', space=sflag, size = 0x4, scoped, tag = 'scoped memory for tpu_custom_call.1']
    #allocation4 [shape = 's32[1]{0}', space=sflag, size = 0x4, scoped, tag = 'scoped memory for tpu_custom_call.1']
    #allocation5 [shape = 'u8[2048]{0}', space=vmem, size = 0x800, scoped, tag = 'input window, operand 1, single buffered']
    #allocation6 [shape = 's32[1]{0}', space=sflag, size = 0x4, scoped, tag = 'scoped memory for tpu_custom_call.1']
    #allocation7 [shape = 'u8[4096]{0}', space=vmem, size = 0x1000, scoped, tag = 'output window, operand 0, single buffered']
    #allocation8 [shape = 'u8[512]{0}', space=vmem, size = 0x400, scoped, tag = 'output window, operand 1, single buffered']
    #allocation9 [shape = 's32[1]{0}', space=sflag, size = 0x4, scoped, tag = 'scoped memory for tpu_custom_call.1']
    #allocation10 [shape = 'u8[512]{0}', space=vmem, size = 0x400, scoped, tag = 'output window, operand 2, single buffered']
    #allocation11 [shape = 'u8[512]{0}', space=vmem, size = 0x400, scoped, tag = 'output window, operand 3, single buffered']
    #allocation12 [shape = 's32[1]{0}', space=sflag, size = 0x4, scoped, tag = 'scoped memory for tpu_custom_call.1']
    %12 = vsyncpa [#allocation3], 0
    %13 = vsyncpa [#allocation6], 0
    %14 = vsyncpa [#allocation4], 0
    %15 = vsyncpa [#allocation9], 0
    %16 = vsyncpa [#allocation12], 0
    // Predicated region
    $region2: #{tpu_custom_call.1} parent=1 // pred_check
      _
    $region3: #{tpu_custom_call.1} parent=1 // pred_check_branch
      %18 = sbr.rel (0) target = $region5
    $region4: #{tpu_custom_call.1} parent=1 // pred_region
      %s20 = ssub.s32 256, 256
      %21 = vsyncadd [#allocation3], %s20
      %s22 = sshll.u32 [#allocation2], 4
      %s23 = int_to_ptr.vmem [resolvable:$true] %s22
      %28 = dma.hbm_to_vmem [thread:$0]  %s0, 256, %s23, [#allocation3], 128, 128, 8
    $region5: #{tpu_custom_call.1} parent=1 // pred_fallthru
      _
    // Predicated region
    $region6: #{tpu_custom_call.1} parent=1 // pred_check
      _
    $region7: #{tpu_custom_call.1} parent=1 // pred_check_branch
      %30 = sbr.rel (0) target = $region9
    $region8: #{tpu_custom_call.1} parent=1 // pred_region
      %s32 = ssub.s32 64, 64
      %33 = vsyncadd [#allocation6], %s32
      %s34 = sshll.u32 [#allocation5], 4
      %s35 = int_to_ptr.vmem [resolvable:$true] %s34
      %40 = dma.hbm_to_vmem [thread:$0]  %s1, 64, %s35, [#allocation6], 32, 32, 2
    $region9: #{tpu_custom_call.1} parent=1 // pred_fallthru
      _
    // Predicated region
    $region10: #{tpu_custom_call.1} parent=1 // pred_check
      _
    $region11: #{tpu_custom_call.1} parent=1 // pred_check_branch
      %42 = sbr.rel (0) target = $region13
    $region12: #{tpu_custom_call.1} parent=1 // pred_region
      _
    $region13: #{tpu_custom_call.1} parent=1 // pred_fallthru
      _
    // Predicated region
    $region14: #{tpu_custom_call.1} parent=1 // pred_check
      _
    $region15: #{tpu_custom_call.1} parent=1 // pred_check_branch
      %44 = sbr.rel (0) target = $region17
    $region16: #{tpu_custom_call.1} parent=1 // pred_region
      %45 = dma.done [#allocation3], 256
    $region17: #{tpu_custom_call.1} parent=1 // pred_fallthru
      _
    // Predicated region
    $region18: #{tpu_custom_call.1} parent=1 // pred_check
      _
    $region19: #{tpu_custom_call.1} parent=1 // pred_check_branch
      %47 = sbr.rel (0) target = $region21
    $region20: #{tpu_custom_call.1} parent=1 // pred_region
      %48 = dma.done [#allocation6], 64
    $region21: #{tpu_custom_call.1} parent=1 // pred_fallthru
      _
    %v49 = vld [vmem:[#allocation2] sm:$0xff]
    %v50 = vld [vmem:[#allocation2 + $0x8] sm:$0xff]
    %v51 = vld [vmem:[#allocation5] sm:$0x3]
    %v52 = vld [vmem:[#allocation5 + $0x2] sm:$0x3]
    %v53 = vunpack.c.0.s8 %v51
    %v54 = vunpack.c.0.s8 %v52
    %v55 = vcvt.s32.f32 %v53
    %v56 = vcvt.s32.f32 %v54
    %v57 = vld [vmem:[%s2] sm:$0x3]
    %v58 = vld [vmem:[%s2 + $0x2] sm:$0x3]
    %v59 = vunpack.c.0.s8 %v57
    %v60 = vunpack.c.0.s8 %v58
    %v61 = vcvt.s32.f32 %v59
    %v62 = vcvt.s32.f32 %v60
    %v63 = vlog2.pop %v49
    %v64 = vmul.f32 %v63, 0.6931472
    %v65 = vlog2.pop %v50
    %v66 = vmul.f32 %v65, 0.6931472
    %v67 = vmax.f32 %v64, -100.0
    %v68 = vmax.f32 %v66, -100.0
    %v69 = vsub.f32 1.0, %v49
    %v70 = vsub.f32 1.0, %v50
    %v71 = vlog2.pop %v69
    %v72 = vmul.f32 %v71, 0.6931472
    %v73 = vlog2.pop %v70
    %v74 = vmul.f32 %v73, 0.6931472
    %v75 = vmax.f32 %v72, -100.0
    %v76 = vmax.f32 %v74, -100.0
    %v77 = vmul.f32 %v55, %v67
    %v78 = vmul.f32 %v56, %v68
    %v79 = vsub.f32 1.0, %v55
    %v80 = vsub.f32 1.0, %v56
    %v81 = vmul.f32 %v79, %v75
    %v82 = vmul.f32 %v80, %v76
    %v83 = vadd.f32 %v77, %v81
    %v84 = vadd.f32 %v78, %v82
    %v85 = vsub.f32 0.0, %v83
    %v86 = vsub.f32 0.0, %v84
    %v87 = vmul.f32 %v55, %v61
    %v88 = vmul.f32 %v56, %v62
    %v89 = vmul.f32 %v79, %v61
    %v90 = vmul.f32 %v80, %v62
    %v91 = vmul.f32 %v89, %v85
    %v92 = vmul.f32 %v90, %v86
    %v93 = vpack.c.bf16 %v92, %v91
    %v95 = vunpack.c.l.b16 %v93
    %v96 = vunpack.c.h.b16 %v93
    %v97 = vpack.c.b16 %v95, %v95
    %v98 = vpack.c.b16 %v96, %v96
    %101 = vst [vmem:[#allocation7] sm:$0xf] %v97
    %102 = vst [vmem:[#allocation7 + $0x4] sm:$0xf] %v98
    %v103 = vadd.f32 %v87, %v88
    %v104 = vrot.slane %v103, 4
    %v105 = vadd.f32 %v103, %v104
    %v106 = vrot.slane %v105, 2
    %v107 = vadd.f32 %v105, %v106
    %v108 = vrot.slane %v107, 1
    %v109 = vadd.f32 %v107, %v108
    %110 = vst [vmem:[#allocation8] sm:$0x1] %v109
    %v111 = vadd.f32 %v89, %v90
    %v112 = vrot.slane %v111, 4
    %v113 = vadd.f32 %v111, %v112
    %v114 = vrot.slane %v113, 2
    %v115 = vadd.f32 %v113, %v114
    %v116 = vrot.slane %v115, 1
    %v117 = vadd.f32 %v115, %v116
    %118 = vst [vmem:[#allocation10] sm:$0x1] %v117
    %v119 = vmul.f32 %v87, %v85
    %v120 = vmul.f32 %v88, %v86
    %v121 = vadd.f32 %v119, %v120
    %v122 = vrot.slane %v121, 4
    %v123 = vadd.f32 %v121, %v122
    %v124 = vrot.slane %v123, 2
    %v125 = vadd.f32 %v123, %v124
    %v126 = vrot.slane %v125, 1
    %v127 = vadd.f32 %v125, %v126
    %128 = vst [vmem:[#allocation11] sm:$0x1] %v127
    // Predicated region
    $region22: #{tpu_custom_call.1} parent=1 // pred_check
      _
    $region23: #{tpu_custom_call.1} parent=1 // pred_check_branch
      %130 = sbr.rel (0) target = $region25
    $region24: #{tpu_custom_call.1} parent=1 // pred_region
      %s132 = ssub.s32 128, 128
      %133 = vsyncadd [#allocation4], %s132
      %s134 = sshll.u32 [#allocation7], 4
      %s135 = int_to_ptr.vmem [resolvable:$true] %s134
      %140 = dma.vmem_to_hbm [thread:$0]  %s135, 128, %s3, [#allocation4], 64, 64, 4
    $region25: #{tpu_custom_call.1} parent=1 // pred_fallthru
      _
    // Predicated region
    $region26: #{tpu_custom_call.1} parent=1 // pred_check
      _
    $region27: #{tpu_custom_call.1} parent=1 // pred_check_branch
      %142 = sbr.rel (0) target = $region29
    $region28: #{tpu_custom_call.1} parent=1 // pred_region
      %s144 = ssub.s32 16, 16
      %145 = vsyncadd [#allocation9], %s144
      %s147 = sshll.u32 [#allocation8], 4
      %s148 = int_to_ptr.vmem [resolvable:$true] %s147
      %150 = dma.vmem_to_hbm [thread:$0]  %s148, 16, %s4, [#allocation9]
    $region29: #{tpu_custom_call.1} parent=1 // pred_fallthru
      _
    // Predicated region
    $region30: #{tpu_custom_call.1} parent=1 // pred_check
      _
    $region31: #{tpu_custom_call.1} parent=1 // pred_check_branch
      %152 = sbr.rel (0) target = $region33
    $region32: #{tpu_custom_call.1} parent=1 // pred_region
      %s154 = ssub.s32 16, 16
      %155 = vsyncadd [#allocation9], %s154
      %s157 = sshll.u32 [#allocation10], 4
      %s158 = int_to_ptr.vmem [resolvable:$true] %s157
      %160 = dma.vmem_to_hbm [thread:$0]  %s158, 16, %s5, [#allocation9]
    $region33: #{tpu_custom_call.1} parent=1 // pred_fallthru
      _
    // Predicated region
    $region34: #{tpu_custom_call.1} parent=1 // pred_check
      _
    $region35: #{tpu_custom_call.1} parent=1 // pred_check_branch
      %162 = sbr.rel (0) target = $region37
    $region36: #{tpu_custom_call.1} parent=1 // pred_region
      %s164 = ssub.s32 16, 16
      %165 = vsyncadd [#allocation12], %s164
      %s167 = sshll.u32 [#allocation11], 4
      %s168 = int_to_ptr.vmem [resolvable:$true] %s167
      %170 = dma.vmem_to_hbm [thread:$0]  %s168, 16, %s6, [#allocation12]
    $region37: #{tpu_custom_call.1} parent=1 // pred_fallthru
      _
    // Predicated region
    $region38: #{tpu_custom_call.1} parent=1 // pred_check
      _
    $region39: #{tpu_custom_call.1} parent=1 // pred_check_branch
      %172 = sbr.rel (0) target = $region41
    $region40: #{tpu_custom_call.1} parent=1 // pred_region
      %173 = dma.done [#allocation4], 128
    $region41: #{tpu_custom_call.1} parent=1 // pred_fallthru
      _
    // Predicated region
    $region42: #{tpu_custom_call.1} parent=1 // pred_check
      _
    $region43: #{tpu_custom_call.1} parent=1 // pred_check_branch
      %175 = sbr.rel (0) target = $region45
    $region44: #{tpu_custom_call.1} parent=1 // pred_region
      %176 = dma.done [#allocation9], 16
    $region45: #{tpu_custom_call.1} parent=1 // pred_fallthru
      _
    // Predicated region
    $region46: #{tpu_custom_call.1} parent=1 // pred_check
      _
    $region47: #{tpu_custom_call.1} parent=1 // pred_check_branch
      %178 = sbr.rel (0) target = $region49
    $region48: #{tpu_custom_call.1} parent=1 // pred_region
      %179 = dma.done [#allocation9], 16
    $region49: #{tpu_custom_call.1} parent=1 // pred_fallthru
      _
    // Predicated region
    $region50: #{tpu_custom_call.1} parent=1 // pred_check
      _
    $region51: #{tpu_custom_call.1} parent=1 // pred_check_branch
      %181 = sbr.rel (0) target = $region53
    $region52: #{tpu_custom_call.1} parent=1 // pred_region
      %182 = dma.done [#allocation12], 16
    $region53: #{tpu_custom_call.1} parent=1 // pred_fallthru
      _
    %183 = vsyncpa [#allocation3], 1
    %184 = vsyncpa [#allocation6], 1
    %185 = vsyncpa [#allocation4], 1
    %186 = vsyncpa [#allocation9], 1
    %187 = vsyncpa [#allocation12], 1

</llo_original>
